<compile_context>
chip_gen: v7x
topology: tpu7x:2x2x1
jax: 0.10.0
libtpu: 0.0.40
codegen_flags: <defaults>
</compile_context>

<pallas_src>
import jax
import jax.numpy as jnp
from jax.experimental import pallas as pl
from jax.experimental.pallas import tpu as pltpu


def _dw_xcorr_kernel(z_ref, x_ref, o_ref):
    """Depthwise cross-correlation for one (C-tile, output-row-tile).

    z_ref: (Hz, Wz, Ct)      template tap weights for this C tile
    x_ref: (Hx_pad, Wx, Ct)  H-padded search features for this C tile
    o_ref: (TH, Wo, Ct)      output rows [i*TH, i*TH + TH) for this C tile
      out[i*TH + r, j, c] = sum_{p,q} x[i*TH + r + p, j + q, c] * z[p, q, c]
    """
    Hz, Wz, _ = z_ref.shape
    TH, Wo, Ct = o_ref.shape
    Wx = x_ref.shape[1]

    row0 = pl.multiple_of(pl.program_id(1) * TH, TH)

    # Template taps: one load + one f32 cast; pre-extract the Hz*Wz lane
    # vectors BEFORE the unrolled loops (no per-tap re-issue inside the body).
    zv = z_ref[...].astype(jnp.float32)                              # (Hz, Wz, Ct)
    z_taps = [[zv[p:p + 1, q:q + 1, :] for q in range(Wz)] for p in range(Hz)]

    # Search slab: one load, kept in its native dtype (bf16 stays bf16); the
    # per-tap multiply promotes into the f32 accumulator.
    xv = x_ref[pl.ds(row0, TH + Hz - 1), :, :]                       # (TH+Hz-1, Wx, Ct)

    # Accumulate at full width Wx; the (possibly sublane-unaligned) :Wo slice
    # is applied exactly once at the store.  Roll wrap-around columns only
    # reach j >= Wx - q >= Wo, i.e. the dropped region, so this is exact.
    acc = jnp.zeros((TH, Wx, Ct), jnp.float32)
    for q in range(Wz):                       # W shifts via the XLU (idle slot)
        shift = (-q) % Wx
        xq = pltpu.roll(xv, shift=shift, axis=1) if shift else xv
        for p in range(Hz):                   # H shifts: static leading-dim slices
            acc = acc + xq[p:p + TH, :, :] * z_taps[p][q]
    o_ref[...] = acc[:, :Wo, :].astype(o_ref.dtype)


def rpn_dw_xcorr_hwbc(z, x, *, th=4, ct=None):
    """Depthwise cross-correlation on channels-last-folded tensors.

    z: (Hz, Wz, C), x: (Hx, Wx, C) with C = batch * channels on the lane axis.
    Returns (Ho, Wo, C).  For best lane utilization C should be a multiple of
    128 (true at production SiamRPN sizes, e.g. C = B*256).
    """
    Hz, Wz, C = z.shape
    Hx, Wx, Cx = x.shape
    assert C == Cx, (C, Cx)
    Ho, Wo = Hx - Hz + 1, Wx - Wz + 1
    assert Ho >= 1 and Wo >= 1

    # Lane-axis (C) tile: 128 lanes per grid step when C allows it (keeps the
    # f32 accumulator + rolled slab within the 64-vreg budget), else full C.
    if ct is None:
        ct = 128 if (C % 128 == 0) else C
    assert C % ct == 0, (C, ct)
    n_c = C // ct

    th = max(1, min(th, Ho))
    n_h = pl.cdiv(Ho, th)

    # Pad x along H so every row tile's input window [i*th, i*th + th + Hz - 1)
    # is in bounds; extra output rows fall past Ho and Pallas masks them off.
    hx_need = n_h * th + Hz - 1
    if hx_need > Hx:
        x = jnp.pad(x, ((0, hx_need - Hx), (0, 0), (0, 0)))
    hx_pad = x.shape[0]

    # VMEM budget: always set, derived from the double-buffered block footprint
    # and clamped to ~75% of this chip's physical VMEM (v7x: 64 MiB per TC).
    x_isz = jnp.dtype(x.dtype).itemsize
    blk_bytes = (hx_pad * Wx + Hz * Wz + th * Wo) * ct * x_isz
    vmem_need = 2 * blk_bytes                       # default double-buffering
    try:
        vmem_cap = pltpu.get_tpu_info().vmem_capacity_bytes
    except Exception:
        vmem_cap = 64 * 1024 * 1024                 # conservative: v7x per-TC
    vmem_limit = int(min(max(2 * vmem_need, 32 * 1024 * 1024),
                         (3 * vmem_cap) // 4))

    return pl.pallas_call(
        _dw_xcorr_kernel,
        out_shape=jax.ShapeDtypeStruct((Ho, Wo, C), x.dtype),
        grid=(n_c, n_h),                            # C outermost: z/x re-DMA only on C change
        in_specs=[
            pl.BlockSpec((Hz, Wz, ct), lambda c, i: (0, 0, c)),
            pl.BlockSpec((hx_pad, Wx, ct), lambda c, i: (0, 0, c)),
        ],
        out_specs=pl.BlockSpec((th, Wo, ct), lambda c, i: (i, 0, c)),
        compiler_params=pltpu.CompilerParams(
            dimension_semantics=("parallel", "parallel"),
            vmem_limit_bytes=vmem_limit,
        ),
    )(z, x)


def rpn_forward(z_f, x_f, *, th=4):
    """z_f: (B, C, Hz, Wz), x_f: (B, C, Hx, Wx)  (NCHW, like PyTorch).

    Returns (B, C, Ho, Wo) depthwise cross-correlation response map.
    NCHW <-> (H, W, B*C) glue happens once here for PyTorch parity; production
    code that keeps features channels-last should call rpn_dw_xcorr_hwbc
    directly and avoid these relayout passes.
    """
    B, C, Hz, Wz = z_f.shape
    Bx, Cx, Hx, Wx = x_f.shape
    assert B == Bx and C == Cx
    Ho, Wo = Hx - Hz + 1, Wx - Wz + 1

    # Fold batch + channels onto the lane axis (single layout pass per tensor).
    z2 = jnp.transpose(z_f, (2, 3, 0, 1)).reshape(Hz, Wz, B * C)
    x2 = jnp.transpose(x_f, (2, 3, 0, 1)).reshape(Hx, Wx, B * C)

    out2 = rpn_dw_xcorr_hwbc(z2, x2, th=th)          # (Ho, Wo, B*C)

    return jnp.transpose(out2.reshape(Ho, Wo, B, C), (2, 3, 0, 1))


def _ref_dw_xcorr(z_f, x_f):
    """Pure-JAX reference (equivalent to F.conv2d with groups=B*C in PyTorch)."""
    B, C, Hz, Wz = z_f.shape
    Hx, Wx = x_f.shape[2], x_f.shape[3]
    Ho, Wo = Hx - Hz + 1, Wx - Wz + 1
    out = jnp.zeros((B, C, Ho, Wo), jnp.float32)
    for p in range(Hz):
        for q in range(Wz):
            out = out + (x_f[:, :, p:p + Ho, q:q + Wo].astype(jnp.float32)
                         * z_f[:, :, p:p + 1, q:q + 1].astype(jnp.float32))
    return out.astype(x_f.dtype)


if __name__ == "__main__":
    key = jax.random.PRNGKey(0)
    kz, kx = jax.random.split(key)

    B, C = 2, 16
    Hz, Wz = 4, 4      # template feature map
    Hx, Wx = 16, 16    # search feature map

    z_f = jax.random.normal(kz, (B, C, Hz, Wz), dtype=jnp.float32)
    x_f = jax.random.normal(kx, (B, C, Hx, Wx), dtype=jnp.float32)

    out = jax.jit(rpn_forward)(z_f, x_f)
    jax.block_until_ready(out)

    ref = _ref_dw_xcorr(z_f, x_f)
    assert out.shape == (B, C, Hx - Hz + 1, Wx - Wz + 1), out.shape
    assert jnp.allclose(out, ref, atol=1e-5, rtol=1e-5), "mismatch vs reference"

    print("KERNEL_OK")
</pallas_src>

<mosaic_0001>
module attributes {stable_mosaic.version = 11 : i64} {
  func.func @_dw_xcorr_kernel(%arg0: i32, %arg1: i32, %arg2: memref<4x4x32xf32, #tpu.memory_space<vmem>>, %arg3: memref<19x16x32xf32, #tpu.memory_space<vmem>>, %arg4: memref<4x13x32xf32, #tpu.memory_space<vmem>>) attributes {dimension_semantics = [#tpu.dimension_semantics<parallel>, #tpu.dimension_semantics<parallel>], iteration_bounds = array<i64: 1, 4>, scalar_prefetch = 0 : i64, scratch_operands = 0 : i64, tpu.core_type = #tpu.core_type<tc>, window_params = [{transform_indices = @transform_0, window_bounds = array<i64: 4, 4, 32>}, {transform_indices = @transform_1, window_bounds = array<i64: 19, 16, 32>}, {transform_indices = @transform_2, window_bounds = array<i64: 4, 13, 32>}]} {
    %c4_i32 = arith.constant 4 : i32
    %0 = arith.muli %arg1, %c4_i32 : i32
    %1 = tpu.assume_multiple %0, 4 : i32
    %c0 = arith.constant 0 : index
    %c0_0 = arith.constant 0 : index
    %c0_1 = arith.constant 0 : index
    %2 = vector.load %arg2[%c0, %c0_0, %c0_1] : memref<4x4x32xf32, #tpu.memory_space<vmem>>, vector<4x4x32xf32>
    %3 = vector.extract_strided_slice %2 {offsets = [0, 0, 0], sizes = [1, 1, 32], strides = [1, 1, 1]} : vector<4x4x32xf32> to vector<1x1x32xf32>
    %4 = vector.extract_strided_slice %2 {offsets = [0, 1, 0], sizes = [1, 1, 32], strides = [1, 1, 1]} : vector<4x4x32xf32> to vector<1x1x32xf32>
    %5 = vector.extract_strided_slice %2 {offsets = [0, 2, 0], sizes = [1, 1, 32], strides = [1, 1, 1]} : vector<4x4x32xf32> to vector<1x1x32xf32>
    %6 = vector.extract_strided_slice %2 {offsets = [0, 3, 0], sizes = [1, 1, 32], strides = [1, 1, 1]} : vector<4x4x32xf32> to vector<1x1x32xf32>
    %7 = vector.extract_strided_slice %2 {offsets = [1, 0, 0], sizes = [1, 1, 32], strides = [1, 1, 1]} : vector<4x4x32xf32> to vector<1x1x32xf32>
    %8 = vector.extract_strided_slice %2 {offsets = [1, 1, 0], sizes = [1, 1, 32], strides = [1, 1, 1]} : vector<4x4x32xf32> to vector<1x1x32xf32>
    %9 = vector.extract_strided_slice %2 {offsets = [1, 2, 0], sizes = [1, 1, 32], strides = [1, 1, 1]} : vector<4x4x32xf32> to vector<1x1x32xf32>
    %10 = vector.extract_strided_slice %2 {offsets = [1, 3, 0], sizes = [1, 1, 32], strides = [1, 1, 1]} : vector<4x4x32xf32> to vector<1x1x32xf32>
    %11 = vector.extract_strided_slice %2 {offsets = [2, 0, 0], sizes = [1, 1, 32], strides = [1, 1, 1]} : vector<4x4x32xf32> to vector<1x1x32xf32>
    %12 = vector.extract_strided_slice %2 {offsets = [2, 1, 0], sizes = [1, 1, 32], strides = [1, 1, 1]} : vector<4x4x32xf32> to vector<1x1x32xf32>
    %13 = vector.extract_strided_slice %2 {offsets = [2, 2, 0], sizes = [1, 1, 32], strides = [1, 1, 1]} : vector<4x4x32xf32> to vector<1x1x32xf32>
    %14 = vector.extract_strided_slice %2 {offsets = [2, 3, 0], sizes = [1, 1, 32], strides = [1, 1, 1]} : vector<4x4x32xf32> to vector<1x1x32xf32>
    %15 = vector.extract_strided_slice %2 {offsets = [3, 0, 0], sizes = [1, 1, 32], strides = [1, 1, 1]} : vector<4x4x32xf32> to vector<1x1x32xf32>
    %16 = vector.extract_strided_slice %2 {offsets = [3, 1, 0], sizes = [1, 1, 32], strides = [1, 1, 1]} : vector<4x4x32xf32> to vector<1x1x32xf32>
    %17 = vector.extract_strided_slice %2 {offsets = [3, 2, 0], sizes = [1, 1, 32], strides = [1, 1, 1]} : vector<4x4x32xf32> to vector<1x1x32xf32>
    %18 = vector.extract_strided_slice %2 {offsets = [3, 3, 0], sizes = [1, 1, 32], strides = [1, 1, 1]} : vector<4x4x32xf32> to vector<1x1x32xf32>
    %19 = arith.index_cast %1 : i32 to index
    %c0_2 = arith.constant 0 : index
    %c0_3 = arith.constant 0 : index
    %20 = vector.load %arg3[%19, %c0_2, %c0_3] : memref<19x16x32xf32, #tpu.memory_space<vmem>>, vector<7x16x32xf32>
    %cst = arith.constant 0.000000e+00 : f32
    %21 = vector.broadcast %cst : f32 to vector<4x16x32xf32>
    %22 = vector.extract_strided_slice %20 {offsets = [0, 0, 0], sizes = [4, 16, 32], strides = [1, 1, 1]} : vector<7x16x32xf32> to vector<4x16x32xf32>
    %23 = vector.broadcast %3 : vector<1x1x32xf32> to vector<4x16x32xf32>
    %24 = arith.mulf %22, %23 : vector<4x16x32xf32>
    %25 = arith.addf %21, %24 : vector<4x16x32xf32>
    %26 = vector.extract_strided_slice %20 {offsets = [1, 0, 0], sizes = [4, 16, 32], strides = [1, 1, 1]} : vector<7x16x32xf32> to vector<4x16x32xf32>
    %27 = vector.broadcast %7 : vector<1x1x32xf32> to vector<4x16x32xf32>
    %28 = arith.mulf %26, %27 : vector<4x16x32xf32>
    %29 = arith.addf %25, %28 : vector<4x16x32xf32>
    %30 = vector.extract_strided_slice %20 {offsets = [2, 0, 0], sizes = [4, 16, 32], strides = [1, 1, 1]} : vector<7x16x32xf32> to vector<4x16x32xf32>
    %31 = vector.broadcast %11 : vector<1x1x32xf32> to vector<4x16x32xf32>
    %32 = arith.mulf %30, %31 : vector<4x16x32xf32>
    %33 = arith.addf %29, %32 : vector<4x16x32xf32>
    %34 = vector.extract_strided_slice %20 {offsets = [3, 0, 0], sizes = [4, 16, 32], strides = [1, 1, 1]} : vector<7x16x32xf32> to vector<4x16x32xf32>
    %35 = vector.broadcast %15 : vector<1x1x32xf32> to vector<4x16x32xf32>
    %36 = arith.mulf %34, %35 : vector<4x16x32xf32>
    %37 = arith.addf %33, %36 : vector<4x16x32xf32>
    %c15_i32 = arith.constant 15 : i32
    %38 = tpu.dynamic_rotate %20 by %c15_i32 dim 1 : vector<7x16x32xf32>, i32 -> vector<7x16x32xf32>
    %39 = vector.extract_strided_slice %38 {offsets = [0, 0, 0], sizes = [4, 16, 32], strides = [1, 1, 1]} : vector<7x16x32xf32> to vector<4x16x32xf32>
    %40 = vector.broadcast %4 : vector<1x1x32xf32> to vector<4x16x32xf32>
    %41 = arith.mulf %39, %40 : vector<4x16x32xf32>
    %42 = arith.addf %37, %41 : vector<4x16x32xf32>
    %43 = vector.extract_strided_slice %38 {offsets = [1, 0, 0], sizes = [4, 16, 32], strides = [1, 1, 1]} : vector<7x16x32xf32> to vector<4x16x32xf32>
    %44 = vector.broadcast %8 : vector<1x1x32xf32> to vector<4x16x32xf32>
    %45 = arith.mulf %43, %44 : vector<4x16x32xf32>
    %46 = arith.addf %42, %45 : vector<4x16x32xf32>
    %47 = vector.extract_strided_slice %38 {offsets = [2, 0, 0], sizes = [4, 16, 32], strides = [1, 1, 1]} : vector<7x16x32xf32> to vector<4x16x32xf32>
    %48 = vector.broadcast %12 : vector<1x1x32xf32> to vector<4x16x32xf32>
    %49 = arith.mulf %47, %48 : vector<4x16x32xf32>
    %50 = arith.addf %46, %49 : vector<4x16x32xf32>
    %51 = vector.extract_strided_slice %38 {offsets = [3, 0, 0], sizes = [4, 16, 32], strides = [1, 1, 1]} : vector<7x16x32xf32> to vector<4x16x32xf32>
    %52 = vector.broadcast %16 : vector<1x1x32xf32> to vector<4x16x32xf32>
    %53 = arith.mulf %51, %52 : vector<4x16x32xf32>
    %54 = arith.addf %50, %53 : vector<4x16x32xf32>
    %c14_i32 = arith.constant 14 : i32
    %55 = tpu.dynamic_rotate %20 by %c14_i32 dim 1 : vector<7x16x32xf32>, i32 -> vector<7x16x32xf32>
    %56 = vector.extract_strided_slice %55 {offsets = [0, 0, 0], sizes = [4, 16, 32], strides = [1, 1, 1]} : vector<7x16x32xf32> to vector<4x16x32xf32>
    %57 = vector.broadcast %5 : vector<1x1x32xf32> to vector<4x16x32xf32>
    %58 = arith.mulf %56, %57 : vector<4x16x32xf32>
    %59 = arith.addf %54, %58 : vector<4x16x32xf32>
    %60 = vector.extract_strided_slice %55 {offsets = [1, 0, 0], sizes = [4, 16, 32], strides = [1, 1, 1]} : vector<7x16x32xf32> to vector<4x16x32xf32>
    %61 = vector.broadcast %9 : vector<1x1x32xf32> to vector<4x16x32xf32>
    %62 = arith.mulf %60, %61 : vector<4x16x32xf32>
    %63 = arith.addf %59, %62 : vector<4x16x32xf32>
    %64 = vector.extract_strided_slice %55 {offsets = [2, 0, 0], sizes = [4, 16, 32], strides = [1, 1, 1]} : vector<7x16x32xf32> to vector<4x16x32xf32>
    %65 = vector.broadcast %13 : vector<1x1x32xf32> to vector<4x16x32xf32>
    %66 = arith.mulf %64, %65 : vector<4x16x32xf32>
    %67 = arith.addf %63, %66 : vector<4x16x32xf32>
    %68 = vector.extract_strided_slice %55 {offsets = [3, 0, 0], sizes = [4, 16, 32], strides = [1, 1, 1]} : vector<7x16x32xf32> to vector<4x16x32xf32>
    %69 = vector.broadcast %17 : vector<1x1x32xf32> to vector<4x16x32xf32>
    %70 = arith.mulf %68, %69 : vector<4x16x32xf32>
    %71 = arith.addf %67, %70 : vector<4x16x32xf32>
    %c13_i32 = arith.constant 13 : i32
    %72 = tpu.dynamic_rotate %20 by %c13_i32 dim 1 : vector<7x16x32xf32>, i32 -> vector<7x16x32xf32>
    %73 = vector.extract_strided_slice %72 {offsets = [0, 0, 0], sizes = [4, 16, 32], strides = [1, 1, 1]} : vector<7x16x32xf32> to vector<4x16x32xf32>
    %74 = vector.broadcast %6 : vector<1x1x32xf32> to vector<4x16x32xf32>
    %75 = arith.mulf %73, %74 : vector<4x16x32xf32>
    %76 = arith.addf %71, %75 : vector<4x16x32xf32>
    %77 = vector.extract_strided_slice %72 {offsets = [1, 0, 0], sizes = [4, 16, 32], strides = [1, 1, 1]} : vector<7x16x32xf32> to vector<4x16x32xf32>
    %78 = vector.broadcast %10 : vector<1x1x32xf32> to vector<4x16x32xf32>
    %79 = arith.mulf %77, %78 : vector<4x16x32xf32>
    %80 = arith.addf %76, %79 : vector<4x16x32xf32>
    %81 = vector.extract_strided_slice %72 {offsets = [2, 0, 0], sizes = [4, 16, 32], strides = [1, 1, 1]} : vector<7x16x32xf32> to vector<4x16x32xf32>
    %82 = vector.broadcast %14 : vector<1x1x32xf32> to vector<4x16x32xf32>
    %83 = arith.mulf %81, %82 : vector<4x16x32xf32>
    %84 = arith.addf %80, %83 : vector<4x16x32xf32>
    %85 = vector.extract_strided_slice %72 {offsets = [3, 0, 0], sizes = [4, 16, 32], strides = [1, 1, 1]} : vector<7x16x32xf32> to vector<4x16x32xf32>
    %86 = vector.broadcast %18 : vector<1x1x32xf32> to vector<4x16x32xf32>
    %87 = arith.mulf %85, %86 : vector<4x16x32xf32>
    %88 = arith.addf %84, %87 : vector<4x16x32xf32>
    %89 = vector.extract_strided_slice %88 {offsets = [0, 0, 0], sizes = [4, 13, 32], strides = [1, 1, 1]} : vector<4x16x32xf32> to vector<4x13x32xf32>
    %c0_4 = arith.constant 0 : index
    %c0_5 = arith.constant 0 : index
    %c0_6 = arith.constant 0 : index
    %90 = vector.load %arg4[%c0_4, %c0_5, %c0_6] : memref<4x13x32xf32, #tpu.memory_space<vmem>>, vector<4x13x32xf32>
    tpu.vector_store %arg4[%c0_4, %c0_5, %c0_6], %89 {strides = array<i32>} : memref<4x13x32xf32, #tpu.memory_space<vmem>>, vector<4x13x32xf32>,
    return
  }
  func.func @transform_0(%arg0: i32, %arg1: i32) -> (i32, i32, i32) {
    %c0_i32 = arith.constant 0 : i32
    %c0_i32_0 = arith.constant 0 : i32
    %c0_i32_1 = arith.constant 0 : i32
    return %c0_i32, %c0_i32_0, %arg0 : i32, i32, i32
  }
  func.func @transform_1(%arg0: i32, %arg1: i32) -> (i32, i32, i32) {
    %c0_i32 = arith.constant 0 : i32
    %c0_i32_0 = arith.constant 0 : i32
    %c0_i32_1 = arith.constant 0 : i32
    return %c0_i32, %c0_i32_0, %arg0 : i32, i32, i32
  }
  func.func @transform_2(%arg0: i32, %arg1: i32) -> (i32, i32, i32) {
    %c0_i32 = arith.constant 0 : i32
    %c0_i32_0 = arith.constant 0 : i32
    return %arg1, %c0_i32, %arg0 : i32, i32, i32
  }
}

</mosaic_0001>

<llo_original>
// kernel: rpn_forward.1
$region0: #{rpn_forward.1}
  #allocation0 [shape = 'u32[]', space=smem, size = 0x4, offset = 0x4, fixed_abs, tag = 'smem constant byte address 0x4 - core index']
  #allocation1 [shape = 'u32[144,128]{1,0:T(1,128)}', space=vmem, size = 0x12000, scoped, tag = 'internal scratch']
  %s0 = inlined_call_operand.vmem [shape: f32[4,4,32], index: 0, kind: input, shape index: {}]
  %s1 = inlined_call_operand.vmem [shape: f32[19,16,32], index: 1, kind: input, shape index: {}]
  %s2 = inlined_call_operand.vmem [shape: f32[13,13,32], index: 2, kind: output, shape index: {}]
  %s3 = sld [smem:[#allocation0]]
  $region89: #{rpn_forward.1} parent=0
    _
  %s5 = ssub.s32 1, %s3
  %s6 = scalar_select 0, %s5, %s3
  $region1: #{rpn_forward.1} parent=0
    #allocation2 [shape = 'u8[65536]{0}', space=vmem, size = 0x10000, scoped, tag = 'output window, operand 0']
    loop: start=0, step=1, limit=6
    $region2: #{rpn_forward.1} parent=1 // loop_pre_header
      _
    $region3: #{rpn_forward.1} parent=1 // loop_header
      %s8 = sphi 0, %s12
      %p9 = scmp.ge.s32.totalorder %s8, 6
      %s15 = sphi 0, %s27
      %s16 = sphi 0, %s23
      %s17 = sphi 0, %s15
      %s18 = sphi 0, %s16
      %s19 = sphi 0, %s17
      %s20 = sphi 0, %s18
      %s30 = sphi 0, %s32
      %s33 = sphi 0, %s30
      %s34 = sphi 0, %s33
      %s50 = sphi 0, %s34
      %s56 = sphi 0, %s58
      %s59 = sphi 0, %s56
      %s60 = sphi 0, %s59
      %s76 = sphi 0, %s60
      %s84 = sphi 0, %s86
      %s87 = sphi 0, %s84
      %s88 = sphi 0, %s87
      %s104 = sphi 0, %s88
    $region4: #{rpn_forward.1} parent=1 // loop_header_branch
      %11 = sbr.rel (%p9) target = $region8
    $region5: #{rpn_forward.1} parent=1 // loop_body
      %s13 = ssub.s32 %s8, 1
      %s14 = ssub.s32 %s8, 2
      %s21 = sadd.s32 1, %s16
      %p22 = scmp.ge.s32.totalorder %s21, 4
      %s23 = scalar_select %p22, 0, %s21
      %s24 = sadd.s32 1, %s15
      %s25 = scalar_select %p22, %s24, %s15
      %p26 = scmp.ge.s32.totalorder %s25, 1
      %s27 = scalar_select %p26, 0, %s25
      %s28 = ssub.s32 %s15, %s27
      %p29 = scmp.eq.s32.totalorder %s28, 0
      %s31 = sadd.s32 %s30, 1
      %s32 = scalar_select %p29, %s30, %s31
      %p35 = pneg %p29
      %p36 = scmp.eq.s32.totalorder %s8, 3
      %p37 = por %p35, %p36
      %p38 = scmp.ne.s32.totalorder %s30, %s33
      %p39 = scmp.eq.s32.totalorder %s8, 0
      %p40 = por %p38, %p39
      %p41 = scmp.ne.s32.totalorder %s30, %s33
      %p42 = scmp.eq.s32.totalorder %s13, 3
      %p43 = por %p41, %p42
      %p44 = scmp.ne.s32.totalorder %s33, %s34
      %p45 = scmp.eq.s32.totalorder %s13, 0
      %p46 = por %p44, %p45
      %p47 = scmp.ne.s32.totalorder %s33, %s34
      %p48 = scmp.eq.s32.totalorder %s14, 3
      %p49 = por %p47, %p48
      %p51 = scmp.ne.s32.totalorder %s34, %s50
      %p52 = scmp.eq.s32.totalorder %s14, 0
      %p53 = por %p51, %p52
      %s54 = ssub.s32 %s15, %s27
      %p55 = scmp.eq.s32.totalorder %s54, 0
      %s57 = sadd.s32 %s56, 1
      %s58 = scalar_select %p55, %s56, %s57
      %p61 = pneg %p55
      %p62 = scmp.eq.s32.totalorder %s8, 3
      %p63 = por %p61, %p62
      %p64 = scmp.ne.s32.totalorder %s56, %s59
      %p65 = scmp.eq.s32.totalorder %s8, 0
      %p66 = por %p64, %p65
      %p67 = scmp.ne.s32.totalorder %s56, %s59
      %p68 = scmp.eq.s32.totalorder %s13, 3
      %p69 = por %p67, %p68
      %p70 = scmp.ne.s32.totalorder %s59, %s60
      %p71 = scmp.eq.s32.totalorder %s13, 0
      %p72 = por %p70, %p71
      %p73 = scmp.ne.s32.totalorder %s59, %s60
      %p74 = scmp.eq.s32.totalorder %s14, 3
      %p75 = por %p73, %p74
      %p77 = scmp.ne.s32.totalorder %s60, %s76
      %p78 = scmp.eq.s32.totalorder %s14, 0
      %p79 = por %p77, %p78
      %s80 = ssub.s32 %s16, %s23
      %s81 = ssub.s32 %s15, %s27
      %s82 = sor.u32 %s80, %s81
      %p83 = scmp.eq.s32.totalorder %s82, 0
      %s85 = sadd.s32 %s84, 1
      %s86 = scalar_select %p83, %s84, %s85
      %p89 = pneg %p83
      %p90 = scmp.eq.s32.totalorder %s8, 3
      %p91 = por %p89, %p90
      %p92 = scmp.ne.s32.totalorder %s84, %s87
      %p93 = scmp.eq.s32.totalorder %s8, 0
      %p94 = por %p92, %p93
      %p95 = scmp.ne.s32.totalorder %s84, %s87
      %p96 = scmp.eq.s32.totalorder %s13, 3
      %p97 = por %p95, %p96
      %p98 = scmp.ne.s32.totalorder %s87, %s88
      %p99 = scmp.eq.s32.totalorder %s13, 0
      %p100 = por %p98, %p99
      %p101 = scmp.ne.s32.totalorder %s87, %s88
      %p102 = scmp.eq.s32.totalorder %s14, 3
      %p103 = por %p101, %p102
      %p105 = scmp.ne.s32.totalorder %s88, %s104
      %p106 = scmp.eq.s32.totalorder %s14, 0
      %p107 = por %p105, %p106
      %p108 = scmp.le.s32.totalorder 1, %s8
      %p109 = scmp.lt.s32.totalorder %s8, 5
      %p110 = pnand %p108, %p109
      %p111 = pneg %p110
      // Predicated region
      $region9: #{rpn_forward.1} parent=5 // pred_check
        _
      $region10: #{rpn_forward.1} parent=5 // pred_check_branch
        %113 = sbr.rel (%p110) target = $region12
      $region11: #{rpn_forward.1} parent=5 // pred_region
        %s114 = ssub.s32 %s8, 1
        // Predicated region
        $region13: #{rpn_forward.1} parent=11 // pred_check
          %p115 = pneg %p46
        $region14: #{rpn_forward.1} parent=11 // pred_check_branch
          %117 = sbr.rel (%p115) target = $region16
        $region15: #{rpn_forward.1} parent=11 // pred_region
          %p118 = scmp.lt.s32.totalorder %s17, 0
          %s119 = scalar_select %p118, %s17, 0
          %s120 = smul.addr %s119, 4
          %s121 = scalar_lea.vmem %s0, %s120
        $region16: #{rpn_forward.1} parent=11 // pred_fallthru
          _
        // Predicated region
        $region17: #{rpn_forward.1} parent=11 // pred_check
          %p122 = pneg %p72
        $region18: #{rpn_forward.1} parent=11 // pred_check_branch
          %124 = sbr.rel (%p122) target = $region20
        $region19: #{rpn_forward.1} parent=11 // pred_region
          %p125 = scmp.lt.s32.totalorder %s17, 0
          %s126 = scalar_select %p125, %s17, 0
          %s127 = smul.addr %s126, 8
          %s128 = scalar_lea.vmem %s1, %s127
        $region20: #{rpn_forward.1} parent=11 // pred_fallthru
          _
      $region12: #{rpn_forward.1} parent=5 // pred_fallthru
        _
      %p129 = scmp.lt.s32.totalorder %s8, 4
      // Predicated region
      $region21: #{rpn_forward.1} parent=5 // pred_check
        %p130 = pneg %p129
      $region22: #{rpn_forward.1} parent=5 // pred_check_branch
        %132 = sbr.rel (%p130) target = $region24
      $region23: #{rpn_forward.1} parent=5 // pred_region
        _
      $region24: #{rpn_forward.1} parent=5 // pred_fallthru
        _
      %p133 = scmp.le.s32.totalorder 1, %s8
      %p134 = scmp.lt.s32.totalorder %s8, 5
      %p135 = pnand %p133, %p134
      %p136 = pneg %p135
      // Predicated region
      $region25: #{rpn_forward.1} parent=5 // pred_check
        _
      $region26: #{rpn_forward.1} parent=5 // pred_check_branch
        %138 = sbr.rel (%p135) target = $region28
      $region27: #{rpn_forward.1} parent=5 // pred_region
        %s139 = ssub.s32 %s8, 1
        %p140 = scmp.lt.s32.totalorder %s17, 0
        %s141 = scalar_select %p140, %s17, 0
        %s142 = smul.addr %s141, 4
        %s143 = scalar_lea.vmem %s0, %s142
        %p144 = pneg %p46
        %p145 = pneg %p43
        %p146 = scmp.lt.s32.totalorder %s17, 0
        %s147 = scalar_select %p146, %s17, 0
        %s148 = smul.addr %s147, 8
        %s149 = scalar_lea.vmem %s1, %s148
        %p150 = pneg %p72
        %p151 = pneg %p69
        %p152 = pneg %p100
        %p153 = pneg %p97
        %s154 = sand.u32 %s87, 1
        %s155 = sand.u32 %s87, 1
        %s156 = smul.addr %s155, 64
        %s157 = scalar_lea.vmem [#allocation2], %s156
        %p158 = scmp.lt.s32.totalorder %s17, 0
        %s159 = scalar_select %p158, %s17, 0
        %s160 = smul.addr %s159, 4
        %s161 = scalar_lea.vmem %s0, %s160
        %p162 = scmp.lt.s32.totalorder %s17, 0
        %s163 = scalar_select %p162, %s17, 0
        %s164 = smul.addr %s163, 8
        %s165 = scalar_lea.vmem %s1, %s164
        %s166 = smul.u32 4, %s18
        %s167 = ssub.s32 13, %s166
        %p168 = scmp.lt.s32.totalorder %s167, 4
        %s169 = scalar_select %p168, %s167, 4
        %s170 = smul.u32 128, %s169
        %s171 = smul.u32 %s170, 2
        %s172 = smul.u32 %s18, 4
        %v173 = vld [vmem:[%s161] sm:$0xf]
        %v174 = vld [vmem:[%s161 + $0x4] sm:$0xf]
        %v175 = vld [vmem:[%s161 + $0x8] sm:$0xf]
        %v176 = vld [vmem:[%s161 + $0xc] sm:$0xf]
        %s177 = smul.u32 %s172, 16
        %s178 = scalar_lea.vmem %s165, %s177
        %v179 = vld [vmem:[%s178] sm:$0xff]
        %v180 = vld [vmem:[%s178 + $0x8] sm:$0xff]
        %v181 = vld [vmem:[%s178 + $0x10] sm:$0xff]
        %v182 = vld [vmem:[%s178 + $0x18] sm:$0xff]
        %v183 = vld [vmem:[%s178 + $0x20] sm:$0xff]
        %v184 = vld [vmem:[%s178 + $0x28] sm:$0xff]
        %v185 = vld [vmem:[%s178 + $0x30] sm:$0xff]
        %v186 = vld [vmem:[%s178 + $0x38] sm:$0xff]
        %v187 = vld [vmem:[%s178 + $0x40] sm:$0xff]
        %v188 = vld [vmem:[%s178 + $0x48] sm:$0xff]
        %v189 = vld [vmem:[%s178 + $0x50] sm:$0xff]
        %v190 = vld [vmem:[%s178 + $0x58] sm:$0xff]
        %v191 = vld [vmem:[%s178 + $0x60] sm:$0xff]
        %v192 = vld [vmem:[%s178 + $0x68] sm:$0xff]
        %v193 = vlaneseq
        %v194 = vshrl.u32 %v193, 7
        %v195 = vsub.s32 0, %v194
        %v196 = vrot.slane %v173, %v195
        %v197 = vmul.f32 %v179, %v196
        %v198 = vmul.f32 %v180, %v196
        %v199 = vmul.f32 %v181, %v196
        %v200 = vmul.f32 %v182, %v196
        %v201 = vmul.f32 %v183, %v196
        %v202 = vmul.f32 %v184, %v196
        %v203 = vmul.f32 %v185, %v196
        %v204 = vmul.f32 %v186, %v196
        %v205 = vadd.f32 %v197, 0.0
        %v206 = vadd.f32 %v198, 0.0
        %v207 = vadd.f32 %v199, 0.0
        %v208 = vadd.f32 %v200, 0.0
        %v209 = vadd.f32 %v201, 0.0
        %v210 = vadd.f32 %v202, 0.0
        %v211 = vadd.f32 %v203, 0.0
        %v212 = vadd.f32 %v204, 0.0
        %v213 = vlaneseq
        %v214 = vshrl.u32 %v213, 7
        %v215 = vsub.s32 0, %v214
        %v216 = vrot.slane %v174, %v215
        %v217 = vmul.f32 %v181, %v216
        %v218 = vmul.f32 %v182, %v216
        %v219 = vmul.f32 %v183, %v216
        %v220 = vmul.f32 %v184, %v216
        %v221 = vmul.f32 %v185, %v216
        %v222 = vmul.f32 %v186, %v216
        %v223 = vmul.f32 %v187, %v216
        %v224 = vmul.f32 %v188, %v216
        %v225 = vadd.f32 %v205, %v217
        %v226 = vadd.f32 %v206, %v218
        %v227 = vadd.f32 %v207, %v219
        %v228 = vadd.f32 %v208, %v220
        %v229 = vadd.f32 %v209, %v221
        %v230 = vadd.f32 %v210, %v222
        %v231 = vadd.f32 %v211, %v223
        %v232 = vadd.f32 %v212, %v224
        %v233 = vlaneseq
        %v234 = vshrl.u32 %v233, 7
        %v235 = vsub.s32 0, %v234
        %v236 = vrot.slane %v175, %v235
        %v237 = vmul.f32 %v183, %v236
        %v238 = vmul.f32 %v184, %v236
        %v239 = vmul.f32 %v185, %v236
        %v240 = vmul.f32 %v186, %v236
        %v241 = vmul.f32 %v187, %v236
        %v242 = vmul.f32 %v188, %v236
        %v243 = vmul.f32 %v189, %v236
        %v244 = vmul.f32 %v190, %v236
        %v245 = vadd.f32 %v225, %v237
        %v246 = vadd.f32 %v226, %v238
        %v247 = vadd.f32 %v227, %v239
        %v248 = vadd.f32 %v228, %v240
        %v249 = vadd.f32 %v229, %v241
        %v250 = vadd.f32 %v230, %v242
        %v251 = vadd.f32 %v231, %v243
        %v252 = vadd.f32 %v232, %v244
        %v253 = vlaneseq
        %v254 = vshrl.u32 %v253, 7
        %v255 = vsub.s32 0, %v254
        %v256 = vrot.slane %v176, %v255
        %v257 = vmul.f32 %v185, %v256
        %v258 = vmul.f32 %v186, %v256
        %v259 = vmul.f32 %v187, %v256
        %v260 = vmul.f32 %v188, %v256
        %v261 = vmul.f32 %v189, %v256
        %v262 = vmul.f32 %v190, %v256
        %v263 = vmul.f32 %v191, %v256
        %v264 = vmul.f32 %v192, %v256
        %v265 = vadd.f32 %v245, %v257
        %v266 = vadd.f32 %v246, %v258
        %v267 = vadd.f32 %v247, %v259
        %v268 = vadd.f32 %v248, %v260
        %v269 = vadd.f32 %v249, %v261
        %v270 = vadd.f32 %v250, %v262
        %v271 = vadd.f32 %v251, %v263
        %v272 = vadd.f32 %v252, %v264
        %v273 = vrot.slane %v179, 1
        %v274 = vrot.slane %v181, 1
        %v275 = vrot.slane %v183, 1
        %v276 = vrot.slane %v185, 1
        %v277 = vrot.slane %v187, 1
        %v278 = vrot.slane %v189, 1
        %v279 = vrot.slane %v191, 1
        %v280 = vrot.slane %v180, 1
        %v281 = vrot.slane %v182, 1
        %v282 = vrot.slane %v184, 1
        %v283 = vrot.slane %v186, 1
        %v284 = vrot.slane %v188, 1
        %v285 = vrot.slane %v190, 1
        %v286 = vrot.slane %v192, 1
        %v287 = vlaneseq
        %v288 = vshrl.u32 %v287, 7
        %vm289 = vcmp.lt.s32.totalorder %v288, 7
        %v290 = vsel %vm289, %v273, %v280
        %v291 = vsel %vm289, %v274, %v281
        %v292 = vsel %vm289, %v275, %v282
        %v293 = vsel %vm289, %v276, %v283
        %v294 = vsel %vm289, %v277, %v284
        %v295 = vsel %vm289, %v278, %v285
        %v296 = vsel %vm289, %v279, %v286
        %v297 = vsel %vm289, %v280, %v273
        %v298 = vsel %vm289, %v281, %v274
        %v299 = vsel %vm289, %v282, %v275
        %v300 = vsel %vm289, %v283, %v276
        %v301 = vsel %vm289, %v284, %v277
        %v302 = vsel %vm289, %v285, %v278
        %v303 = vsel %vm289, %v286, %v279
        %v304 = vlaneseq
        %v305 = vshrl.u32 %v304, 7
        %v306 = vsub.s32 1, %v305
        %v307 = vrot.slane %v173, %v306
        %v308 = vmul.f32 %v290, %v307
        %v309 = vmul.f32 %v297, %v307
        %v310 = vmul.f32 %v291, %v307
        %v311 = vmul.f32 %v298, %v307
        %v312 = vmul.f32 %v292, %v307
        %v313 = vmul.f32 %v299, %v307
        %v314 = vmul.f32 %v293, %v307
        %v315 = vmul.f32 %v300, %v307
        %v316 = vadd.f32 %v265, %v308
        %v317 = vadd.f32 %v266, %v309
        %v318 = vadd.f32 %v267, %v310
        %v319 = vadd.f32 %v268, %v311
        %v320 = vadd.f32 %v269, %v312
        %v321 = vadd.f32 %v270, %v313
        %v322 = vadd.f32 %v271, %v314
        %v323 = vadd.f32 %v272, %v315
        %v324 = vlaneseq
        %v325 = vshrl.u32 %v324, 7
        %v326 = vsub.s32 1, %v325
        %v327 = vrot.slane %v174, %v326
        %v328 = vmul.f32 %v291, %v327
        %v329 = vmul.f32 %v298, %v327
        %v330 = vmul.f32 %v292, %v327
        %v331 = vmul.f32 %v299, %v327
        %v332 = vmul.f32 %v293, %v327
        %v333 = vmul.f32 %v300, %v327
        %v334 = vmul.f32 %v294, %v327
        %v335 = vmul.f32 %v301, %v327
        %v336 = vadd.f32 %v316, %v328
        %v337 = vadd.f32 %v317, %v329
        %v338 = vadd.f32 %v318, %v330
        %v339 = vadd.f32 %v319, %v331
        %v340 = vadd.f32 %v320, %v332
        %v341 = vadd.f32 %v321, %v333
        %v342 = vadd.f32 %v322, %v334
        %v343 = vadd.f32 %v323, %v335
        %v344 = vlaneseq
        %v345 = vshrl.u32 %v344, 7
        %v346 = vsub.s32 1, %v345
        %v347 = vrot.slane %v175, %v346
        %v348 = vmul.f32 %v292, %v347
        %v349 = vmul.f32 %v299, %v347
        %v350 = vmul.f32 %v293, %v347
        %v351 = vmul.f32 %v300, %v347
        %v352 = vmul.f32 %v294, %v347
        %v353 = vmul.f32 %v301, %v347
        %v354 = vmul.f32 %v295, %v347
        %v355 = vmul.f32 %v302, %v347
        %v356 = vadd.f32 %v336, %v348
        %v357 = vadd.f32 %v337, %v349
        %v358 = vadd.f32 %v338, %v350
        %v359 = vadd.f32 %v339, %v351
        %v360 = vadd.f32 %v340, %v352
        %v361 = vadd.f32 %v341, %v353
        %v362 = vadd.f32 %v342, %v354
        %v363 = vadd.f32 %v343, %v355
        %v364 = vlaneseq
        %v365 = vshrl.u32 %v364, 7
        %v366 = vsub.s32 1, %v365
        %v367 = vrot.slane %v176, %v366
        %v368 = vmul.f32 %v293, %v367
        %v369 = vmul.f32 %v300, %v367
        %v370 = vmul.f32 %v294, %v367
        %v371 = vmul.f32 %v301, %v367
        %v372 = vmul.f32 %v295, %v367
        %v373 = vmul.f32 %v302, %v367
        %v374 = vmul.f32 %v296, %v367
        %v375 = vmul.f32 %v303, %v367
        %v376 = vadd.f32 %v356, %v368
        %v377 = vadd.f32 %v357, %v369
        %v378 = vadd.f32 %v358, %v370
        %v379 = vadd.f32 %v359, %v371
        %v380 = vadd.f32 %v360, %v372
        %v381 = vadd.f32 %v361, %v373
        %v382 = vadd.f32 %v362, %v374
        %v383 = vadd.f32 %v363, %v375
        %v384 = vrot.slane %v179, 2
        %v385 = vrot.slane %v181, 2
        %v386 = vrot.slane %v183, 2
        %v387 = vrot.slane %v185, 2
        %v388 = vrot.slane %v187, 2
        %v389 = vrot.slane %v189, 2
        %v390 = vrot.slane %v191, 2
        %v391 = vrot.slane %v180, 2
        %v392 = vrot.slane %v182, 2
        %v393 = vrot.slane %v184, 2
        %v394 = vrot.slane %v186, 2
        %v395 = vrot.slane %v188, 2
        %v396 = vrot.slane %v190, 2
        %v397 = vrot.slane %v192, 2
        %vm398 = vcmp.lt.s32.totalorder %v288, 6
        %v399 = vsel %vm398, %v384, %v391
        %v400 = vsel %vm398, %v385, %v392
        %v401 = vsel %vm398, %v386, %v393
        %v402 = vsel %vm398, %v387, %v394
        %v403 = vsel %vm398, %v388, %v395
        %v404 = vsel %vm398, %v389, %v396
        %v405 = vsel %vm398, %v390, %v397
        %v406 = vsel %vm398, %v391, %v384
        %v407 = vsel %vm398, %v392, %v385
        %v408 = vsel %vm398, %v393, %v386
        %v409 = vsel %vm398, %v394, %v387
        %v410 = vsel %vm398, %v395, %v388
        %v411 = vsel %vm398, %v396, %v389
        %v412 = vsel %vm398, %v397, %v390
        %v413 = vlaneseq
        %v414 = vshrl.u32 %v413, 7
        %v415 = vsub.s32 2, %v414
        %v416 = vrot.slane %v173, %v415
        %v417 = vmul.f32 %v399, %v416
        %v418 = vmul.f32 %v406, %v416
        %v419 = vmul.f32 %v400, %v416
        %v420 = vmul.f32 %v407, %v416
        %v421 = vmul.f32 %v401, %v416
        %v422 = vmul.f32 %v408, %v416
        %v423 = vmul.f32 %v402, %v416
        %v424 = vmul.f32 %v409, %v416
        %v425 = vadd.f32 %v376, %v417
        %v426 = vadd.f32 %v377, %v418
        %v427 = vadd.f32 %v378, %v419
        %v428 = vadd.f32 %v379, %v420
        %v429 = vadd.f32 %v380, %v421
        %v430 = vadd.f32 %v381, %v422
        %v431 = vadd.f32 %v382, %v423
        %v432 = vadd.f32 %v383, %v424
        %v433 = vlaneseq
        %v434 = vshrl.u32 %v433, 7
        %v435 = vsub.s32 2, %v434
        %v436 = vrot.slane %v174, %v435
        %v437 = vmul.f32 %v400, %v436
        %v438 = vmul.f32 %v407, %v436
        %v439 = vmul.f32 %v401, %v436
        %v440 = vmul.f32 %v408, %v436
        %v441 = vmul.f32 %v402, %v436
        %v442 = vmul.f32 %v409, %v436
        %v443 = vmul.f32 %v403, %v436
        %v444 = vmul.f32 %v410, %v436
        %v445 = vadd.f32 %v425, %v437
        %v446 = vadd.f32 %v426, %v438
        %v447 = vadd.f32 %v427, %v439
        %v448 = vadd.f32 %v428, %v440
        %v449 = vadd.f32 %v429, %v441
        %v450 = vadd.f32 %v430, %v442
        %v451 = vadd.f32 %v431, %v443
        %v452 = vadd.f32 %v432, %v444
        %v453 = vlaneseq
        %v454 = vshrl.u32 %v453, 7
        %v455 = vsub.s32 2, %v454
        %v456 = vrot.slane %v175, %v455
        %v457 = vmul.f32 %v401, %v456
        %v458 = vmul.f32 %v408, %v456
        %v459 = vmul.f32 %v402, %v456
        %v460 = vmul.f32 %v409, %v456
        %v461 = vmul.f32 %v403, %v456
        %v462 = vmul.f32 %v410, %v456
        %v463 = vmul.f32 %v404, %v456
        %v464 = vmul.f32 %v411, %v456
        %v465 = vadd.f32 %v445, %v457
        %v466 = vadd.f32 %v446, %v458
        %v467 = vadd.f32 %v447, %v459
        %v468 = vadd.f32 %v448, %v460
        %v469 = vadd.f32 %v449, %v461
        %v470 = vadd.f32 %v450, %v462
        %v471 = vadd.f32 %v451, %v463
        %v472 = vadd.f32 %v452, %v464
        %v473 = vlaneseq
        %v474 = vshrl.u32 %v473, 7
        %v475 = vsub.s32 2, %v474
        %v476 = vrot.slane %v176, %v475
        %v477 = vmul.f32 %v402, %v476
        %v478 = vmul.f32 %v409, %v476
        %v479 = vmul.f32 %v403, %v476
        %v480 = vmul.f32 %v410, %v476
        %v481 = vmul.f32 %v404, %v476
        %v482 = vmul.f32 %v411, %v476
        %v483 = vmul.f32 %v405, %v476
        %v484 = vmul.f32 %v412, %v476
        %v485 = vadd.f32 %v465, %v477
        %v486 = vadd.f32 %v466, %v478
        %v487 = vadd.f32 %v467, %v479
        %v488 = vadd.f32 %v468, %v480
        %v489 = vadd.f32 %v469, %v481
        %v490 = vadd.f32 %v470, %v482
        %v491 = vadd.f32 %v471, %v483
        %v492 = vadd.f32 %v472, %v484
        %v493 = vrot.slane %v179, 3
        %v494 = vrot.slane %v181, 3
        %v495 = vrot.slane %v183, 3
        %v496 = vrot.slane %v185, 3
        %v497 = vrot.slane %v187, 3
        %v498 = vrot.slane %v189, 3
        %v499 = vrot.slane %v191, 3
        %v500 = vrot.slane %v180, 3
        %v501 = vrot.slane %v182, 3
        %v502 = vrot.slane %v184, 3
        %v503 = vrot.slane %v186, 3
        %v504 = vrot.slane %v188, 3
        %v505 = vrot.slane %v190, 3
        %v506 = vrot.slane %v192, 3
        %vm507 = vcmp.lt.s32.totalorder %v288, 5
        %v508 = vsel %vm507, %v493, %v500
        %v509 = vsel %vm507, %v494, %v501
        %v510 = vsel %vm507, %v495, %v502
        %v511 = vsel %vm507, %v496, %v503
        %v512 = vsel %vm507, %v497, %v504
        %v513 = vsel %vm507, %v498, %v505
        %v514 = vsel %vm507, %v499, %v506
        %v515 = vsel %vm507, %v500, %v493
        %v516 = vsel %vm507, %v501, %v494
        %v517 = vsel %vm507, %v502, %v495
        %v518 = vsel %vm507, %v503, %v496
        %v519 = vsel %vm507, %v504, %v497
        %v520 = vsel %vm507, %v505, %v498
        %v521 = vsel %vm507, %v506, %v499
        %v522 = vlaneseq
        %v523 = vshrl.u32 %v522, 7
        %v524 = vsub.s32 3, %v523
        %v525 = vrot.slane %v173, %v524
        %v526 = vmul.f32 %v508, %v525
        %v527 = vmul.f32 %v515, %v525
        %v528 = vmul.f32 %v509, %v525
        %v529 = vmul.f32 %v516, %v525
        %v530 = vmul.f32 %v510, %v525
        %v531 = vmul.f32 %v517, %v525
        %v532 = vmul.f32 %v511, %v525
        %v533 = vmul.f32 %v518, %v525
        %v534 = vadd.f32 %v485, %v526
        %v535 = vadd.f32 %v486, %v527
        %v536 = vadd.f32 %v487, %v528
        %v537 = vadd.f32 %v488, %v529
        %v538 = vadd.f32 %v489, %v530
        %v539 = vadd.f32 %v490, %v531
        %v540 = vadd.f32 %v491, %v532
        %v541 = vadd.f32 %v492, %v533
        %v542 = vlaneseq
        %v543 = vshrl.u32 %v542, 7
        %v544 = vsub.s32 3, %v543
        %v545 = vrot.slane %v174, %v544
        %v546 = vmul.f32 %v509, %v545
        %v547 = vmul.f32 %v516, %v545
        %v548 = vmul.f32 %v510, %v545
        %v549 = vmul.f32 %v517, %v545
        %v550 = vmul.f32 %v511, %v545
        %v551 = vmul.f32 %v518, %v545
        %v552 = vmul.f32 %v512, %v545
        %v553 = vmul.f32 %v519, %v545
        %v554 = vadd.f32 %v534, %v546
        %v555 = vadd.f32 %v535, %v547
        %v556 = vadd.f32 %v536, %v548
        %v557 = vadd.f32 %v537, %v549
        %v558 = vadd.f32 %v538, %v550
        %v559 = vadd.f32 %v539, %v551
        %v560 = vadd.f32 %v540, %v552
        %v561 = vadd.f32 %v541, %v553
        %v562 = vlaneseq
        %v563 = vshrl.u32 %v562, 7
        %v564 = vsub.s32 3, %v563
        %v565 = vrot.slane %v175, %v564
        %v566 = vmul.f32 %v510, %v565
        %v567 = vmul.f32 %v517, %v565
        %v568 = vmul.f32 %v511, %v565
        %v569 = vmul.f32 %v518, %v565
        %v570 = vmul.f32 %v512, %v565
        %v571 = vmul.f32 %v519, %v565
        %v572 = vmul.f32 %v513, %v565
        %v573 = vmul.f32 %v520, %v565
        %v574 = vadd.f32 %v554, %v566
        %v575 = vadd.f32 %v555, %v567
        %v576 = vadd.f32 %v556, %v568
        %v577 = vadd.f32 %v557, %v569
        %v578 = vadd.f32 %v558, %v570
        %v579 = vadd.f32 %v559, %v571
        %v580 = vadd.f32 %v560, %v572
        %v581 = vadd.f32 %v561, %v573
        %v582 = vlaneseq
        %v583 = vshrl.u32 %v582, 7
        %v584 = vsub.s32 3, %v583
        %v585 = vrot.slane %v176, %v584
        %v586 = vmul.f32 %v511, %v585
        %v587 = vmul.f32 %v518, %v585
        %v588 = vmul.f32 %v512, %v585
        %v589 = vmul.f32 %v519, %v585
        %v590 = vmul.f32 %v513, %v585
        %v591 = vmul.f32 %v520, %v585
        %v592 = vmul.f32 %v514, %v585
        %v593 = vmul.f32 %v521, %v585
        %v594 = vadd.f32 %v574, %v586
        %v595 = vadd.f32 %v575, %v587
        %v596 = vadd.f32 %v576, %v588
        %v597 = vadd.f32 %v577, %v589
        %v598 = vadd.f32 %v578, %v590
        %v599 = vadd.f32 %v579, %v591
        %v600 = vadd.f32 %v580, %v592
        %v601 = vadd.f32 %v581, %v593
        %vm602 = vcmask 261120
        %603 = vst.msk [vmem:[%s157] sm:$0xff] %vm602, %v594
        %vm604 = vcmask 258048
        %605 = vst.msk [vmem:[%s157 + $0x8] sm:$0x1f] %vm604, %v595
        %606 = vst.msk [vmem:[%s157 + $0x10] sm:$0xff] %vm602, %v596
        %607 = vst.msk [vmem:[%s157 + $0x18] sm:$0x1f] %vm604, %v597
        %608 = vst.msk [vmem:[%s157 + $0x20] sm:$0xff] %vm602, %v598
        %609 = vst.msk [vmem:[%s157 + $0x28] sm:$0x1f] %vm604, %v599
        %610 = vst.msk [vmem:[%s157 + $0x30] sm:$0xff] %vm602, %v600
        %611 = vst.msk [vmem:[%s157 + $0x38] sm:$0x1f] %vm604, %v601
        %s612 = sand.u32 %s87, 1
        %s613 = sand.u32 %s87, 1
        %s614 = smul.addr %s613, 64
        %s615 = scalar_lea.vmem [#allocation2], %s614
        // Predicated region
        $region29: #{rpn_forward.1} parent=27 // pred_check
          %p616 = pneg %p97
        $region30: #{rpn_forward.1} parent=27 // pred_check_branch
          %618 = sbr.rel (%p616) target = $region32
        $region31: #{rpn_forward.1} parent=27 // pred_region
          %s619 = smul.u32 4, %s18
          %s620 = ssub.s32 13, %s619
          %p621 = scmp.lt.s32.totalorder %s620, 4
          %s622 = scalar_select %p621, %s620, 4
          %s623 = smul.u32 128, %s622
          %s624 = smul.u32 %s623, 2
          %p625 = scmp.ne.s32.totalorder 0, %s624
          %s626 = smul.addr %s619, 2
          %s627 = sadd.s32 %s17, %s626
          %s628 = smul.addr %s627, 8
          %s629 = scalar_lea.vmem %s2, %s628
          %s630 = smul.u32 %s622, 2
          // Predicated region
          $region33: #{rpn_forward.1} parent=31 // pred_check
            %p631 = pneg %p625
          $region34: #{rpn_forward.1} parent=31 // pred_check_branch
            %633 = sbr.rel (%p631) target = $region36
          $region35: #{rpn_forward.1} parent=31 // pred_region
            // Predicated region
            $region37: #{rpn_forward.1} parent=35 // pred_check
              _
            $region38: #{rpn_forward.1} parent=35 // pred_check_branch
              %635 = sbr.rel (0) target = $region40
            $region39: #{rpn_forward.1} parent=35 // pred_region
              // Predicated region
              $region59: #{rpn_forward.1} parent=39 // pred_check
                _
              $region60: #{rpn_forward.1} parent=39 // pred_check_branch
                %698 = sbr.rel (0) target = $region62
              $region61: #{rpn_forward.1} parent=39 // pred_region
                %s699 = sshrl.u32 %s630, 3
                // While loop
                $region63: #{rpn_forward.1} parent=61 // loop_pre_header
                  _
                $region64: #{rpn_forward.1} parent=61 // loop_header
                  %s701 = sphi 0, %s703
                  %p702 = scmp.ge.s32.totalorder %s701, %s699
                  %s706 = sphi 0, %s727
                  %s707 = sphi %s615, %s730
                  %s708 = sphi %s629, %s731
                $region65: #{rpn_forward.1} parent=61 // loop_header_branch
                  %705 = sbr.rel (%p702) target = $region69
                $region66: #{rpn_forward.1} parent=61 // loop_body
                  %v709 = vld [vmem:[%s707] sm:$0xff]
                  %710 = vst [vmem:[%s708] sm:$0xff] %v709
                  %v711 = vld [vmem:[%s707 + $0x8] sm:$0xff]
                  %712 = vst [vmem:[%s708 + $0x8] sm:$0xff] %v711
                  %v713 = vld [vmem:[%s707 + $0x10] sm:$0xff]
                  %714 = vst [vmem:[%s708 + $0x10] sm:$0xff] %v713
                  %v715 = vld [vmem:[%s707 + $0x18] sm:$0xff]
                  %716 = vst [vmem:[%s708 + $0x18] sm:$0xff] %v715
                  %v717 = vld [vmem:[%s707 + $0x20] sm:$0xff]
                  %718 = vst [vmem:[%s708 + $0x20] sm:$0xff] %v717
                  %v719 = vld [vmem:[%s707 + $0x28] sm:$0xff]
                  %720 = vst [vmem:[%s708 + $0x28] sm:$0xff] %v719
                  %v721 = vld [vmem:[%s707 + $0x30] sm:$0xff]
                  %722 = vst [vmem:[%s708 + $0x30] sm:$0xff] %v721
                  %v723 = vld [vmem:[%s707 + $0x38] sm:$0xff]
                  %724 = vst [vmem:[%s708 + $0x38] sm:$0xff] %v723
                  %s725 = sadd.s32 1, %s706
                  %p726 = scmp.ge.s32.totalorder %s725, %s699
                  %s727 = scalar_select %p726, 0, %s725
                  %s728 = smul.u32 %s727, 64
                  %s729 = smul.u32 %s727, 64
                  %s730 = scalar_lea.vmem %s615, %s728 [#allocation2]
                  %s731 = scalar_lea.vmem %s629, %s729
                $region67: #{rpn_forward.1} parent=61 // loop_footer
                  %s703 = sadd.s32 %s701, 1
                $region68: #{rpn_forward.1} parent=61 // loop_footer_branch
                  %700 = sbr.rel target = $region64
                $region69: #{rpn_forward.1} parent=61 // loop_exit
                  _
                %s732 = sshrl.u32 %s630, 3
                %s733 = sand.u32 %s630, 7
                %s734 = smul.u32 %s732, 8
                %s735 = smul.u32 8, %s734
                %s736 = scalar_lea.vmem %s615, %s735 [#allocation2]
                %s737 = smul.u32 8, %s734
                %s738 = scalar_lea.vmem %s629, %s737
                // While loop
                $region70: #{rpn_forward.1} parent=61 // loop_pre_header
                  _
                $region71: #{rpn_forward.1} parent=61 // loop_header
                  %s740 = sphi 0, %s742
                  %p741 = scmp.ge.s32.totalorder %s740, %s733
                  %s745 = sphi 0, %s752
                  %s746 = sphi %s736, %s755
                  %s747 = sphi %s738, %s756
                $region72: #{rpn_forward.1} parent=61 // loop_header_branch
                  %744 = sbr.rel (%p741) target = $region76
                $region73: #{rpn_forward.1} parent=61 // loop_body
                  %v748 = vld [vmem:[%s746] sm:$0xff]
                  %749 = vst [vmem:[%s747] sm:$0xff] %v748
                  %s750 = sadd.s32 1, %s745
                  %p751 = scmp.ge.s32.totalorder %s750, %s733
                  %s752 = scalar_select %p751, 0, %s750
                  %s753 = smul.u32 %s752, 8
                  %s754 = smul.u32 %s752, 8
                  %s755 = scalar_lea.vmem %s736, %s753 [#allocation2]
                  %s756 = scalar_lea.vmem %s738, %s754
                $region74: #{rpn_forward.1} parent=61 // loop_footer
                  %s742 = sadd.s32 %s740, 1
                $region75: #{rpn_forward.1} parent=61 // loop_footer_branch
                  %739 = sbr.rel target = $region71
                $region76: #{rpn_forward.1} parent=61 // loop_exit
                  _
              $region62: #{rpn_forward.1} parent=39 // pred_fallthru
                _
              // Predicated region
              $region77: #{rpn_forward.1} parent=39 // pred_check
                _
              $region78: #{rpn_forward.1} parent=39 // pred_check_branch
                %758 = sbr.rel target = $region80
              $region79: #{rpn_forward.1} parent=39 // pred_region
                _
              $region80: #{rpn_forward.1} parent=39 // pred_fallthru
                _
            $region40: #{rpn_forward.1} parent=35 // pred_fallthru
              _
            // Predicated region
            $region41: #{rpn_forward.1} parent=35 // pred_check
              _
            $region42: #{rpn_forward.1} parent=35 // pred_check_branch
              %637 = sbr.rel target = $region44
            $region43: #{rpn_forward.1} parent=35 // pred_region
              %s639 = sshrl.u32 %s630, 3
              // While loop
              $region45: #{rpn_forward.1} parent=43 // loop_pre_header
                _
              $region46: #{rpn_forward.1} parent=43 // loop_header
                %s641 = sphi 0, %s643
                %p642 = scmp.ge.s32.totalorder %s641, %s639
                %s646 = sphi 0, %s667
                %s647 = sphi %s615, %s670
                %s648 = sphi %s629, %s671
              $region47: #{rpn_forward.1} parent=43 // loop_header_branch
                %645 = sbr.rel (%p642) target = $region51
              $region48: #{rpn_forward.1} parent=43 // loop_body
                %v649 = vld [vmem:[%s647] sm:$0xff]
                %650 = vst [vmem:[%s648] sm:$0xff] %v649
                %v651 = vld [vmem:[%s647 + $0x8] sm:$0xff]
                %652 = vst [vmem:[%s648 + $0x8] sm:$0xff] %v651
                %v653 = vld [vmem:[%s647 + $0x10] sm:$0xff]
                %654 = vst [vmem:[%s648 + $0x10] sm:$0xff] %v653
                %v655 = vld [vmem:[%s647 + $0x18] sm:$0xff]
                %656 = vst [vmem:[%s648 + $0x18] sm:$0xff] %v655
                %v657 = vld [vmem:[%s647 + $0x20] sm:$0xff]
                %658 = vst [vmem:[%s648 + $0x20] sm:$0xff] %v657
                %v659 = vld [vmem:[%s647 + $0x28] sm:$0xff]
                %660 = vst [vmem:[%s648 + $0x28] sm:$0xff] %v659
                %v661 = vld [vmem:[%s647 + $0x30] sm:$0xff]
                %662 = vst [vmem:[%s648 + $0x30] sm:$0xff] %v661
                %v663 = vld [vmem:[%s647 + $0x38] sm:$0xff]
                %664 = vst [vmem:[%s648 + $0x38] sm:$0xff] %v663
                %s665 = sadd.s32 1, %s646
                %p666 = scmp.ge.s32.totalorder %s665, %s639
                %s667 = scalar_select %p666, 0, %s665
                %s668 = smul.u32 %s667, 64
                %s669 = smul.u32 %s667, 64
                %s670 = scalar_lea.vmem %s615, %s668 [#allocation2]
                %s671 = scalar_lea.vmem %s629, %s669
              $region49: #{rpn_forward.1} parent=43 // loop_footer
                %s643 = sadd.s32 %s641, 1
              $region50: #{rpn_forward.1} parent=43 // loop_footer_branch
                %640 = sbr.rel target = $region46
              $region51: #{rpn_forward.1} parent=43 // loop_exit
                _
              %s672 = sshrl.u32 %s630, 3
              %s673 = sand.u32 %s630, 7
              %s674 = smul.u32 %s672, 8
              %s675 = smul.u32 8, %s674
              %s676 = scalar_lea.vmem %s615, %s675 [#allocation2]
              %s677 = smul.u32 8, %s674
              %s678 = scalar_lea.vmem %s629, %s677
              // While loop
              $region52: #{rpn_forward.1} parent=43 // loop_pre_header
                _
              $region53: #{rpn_forward.1} parent=43 // loop_header
                %s680 = sphi 0, %s682
                %p681 = scmp.ge.s32.totalorder %s680, %s673
                %s685 = sphi 0, %s692
                %s686 = sphi %s676, %s695
                %s687 = sphi %s678, %s696
              $region54: #{rpn_forward.1} parent=43 // loop_header_branch
                %684 = sbr.rel (%p681) target = $region58
              $region55: #{rpn_forward.1} parent=43 // loop_body
                %v688 = vld [vmem:[%s686] sm:$0xff]
                %689 = vst [vmem:[%s687] sm:$0xff] %v688
                %s690 = sadd.s32 1, %s685
                %p691 = scmp.ge.s32.totalorder %s690, %s673
                %s692 = scalar_select %p691, 0, %s690
                %s693 = smul.u32 %s692, 8
                %s694 = smul.u32 %s692, 8
                %s695 = scalar_lea.vmem %s676, %s693 [#allocation2]
                %s696 = scalar_lea.vmem %s678, %s694
              $region56: #{rpn_forward.1} parent=43 // loop_footer
                %s682 = sadd.s32 %s680, 1
              $region57: #{rpn_forward.1} parent=43 // loop_footer_branch
                %679 = sbr.rel target = $region53
              $region58: #{rpn_forward.1} parent=43 // loop_exit
                _
            $region44: #{rpn_forward.1} parent=35 // pred_fallthru
              _
          $region36: #{rpn_forward.1} parent=31 // pred_fallthru
            _
          %759 = vnop
        $region32: #{rpn_forward.1} parent=27 // pred_fallthru
          _
      $region28: #{rpn_forward.1} parent=5 // pred_fallthru
        _
      %p760 = scmp.le.s32.totalorder 2, %s8
      // Predicated region
      $region81: #{rpn_forward.1} parent=5 // pred_check
        %p761 = pneg %p760
      $region82: #{rpn_forward.1} parent=5 // pred_check_branch
        %763 = sbr.rel (%p761) target = $region84
      $region83: #{rpn_forward.1} parent=5 // pred_region
        %s764 = ssub.s32 %s8, 2
        // Predicated region
        $region85: #{rpn_forward.1} parent=83 // pred_check
          %p765 = pneg %p103
        $region86: #{rpn_forward.1} parent=83 // pred_check_branch
          %767 = sbr.rel (%p765) target = $region88
        $region87: #{rpn_forward.1} parent=83 // pred_region
          %s768 = sand.u32 %s88, 1
          %s769 = sand.u32 %s88, 1
          %s770 = smul.addr %s769, 64
          %s771 = scalar_lea.vmem [#allocation2], %s770
        $region88: #{rpn_forward.1} parent=83 // pred_fallthru
          _
      $region84: #{rpn_forward.1} parent=5 // pred_fallthru
        _
    $region6: #{rpn_forward.1} parent=1 // loop_footer
      %s12 = sadd.s32 1, %s8
    $region7: #{rpn_forward.1} parent=1 // loop_footer_branch
      %7 = sbr.rel target = $region3
    $region8: #{rpn_forward.1} parent=1 // loop_exit
      _

</llo_original>
